<compile_context>
chip_gen: v7x
topology: tpu7x:2x2x1
jax: 0.10.0
libtpu: 0.0.40
codegen_flags: <defaults>
</compile_context>

<pallas_src>
import math

import jax
import jax.numpy as jnp
from jax import lax
from jax.experimental import pallas as pl
from jax.experimental.pallas import tpu as pltpu

_EPS = 1e-8       # torch.nn.CosineSimilarity default eps
_LN2 = math.log(2.0)


def _softplus(x):
    # numerically stable softplus: max(x,0) + log1p(exp(-|x|))
    return jnp.maximum(x, 0.0) + jnp.log1p(jnp.exp(-jnp.abs(x)))


# ----------------------------------------------------------------------------
# Kernels: operands are pre-normalized (1/temp folded into z1) bf16; one MXU
# matmul per tile, softplus/target math in f32, per-row-tile (tm,1) accumulator.
# ----------------------------------------------------------------------------
def _lahn_nomom_kernel(z1_ref, z2t_ref, labr_ref, labc_ref, out_ref, acc_ref):
    j = pl.program_id(1)

    @pl.when(j == 0)
    def _():
        acc_ref[...] = jnp.zeros_like(acc_ref)

    # (tm, D) bf16 @ (D, tn) bf16 -> (tm, tn) f32
    logits = jnp.dot(z1_ref[...], z2t_ref[...], preferred_element_type=jnp.float32)

    lab_i = labr_ref[...]                      # (tm, 1)  f32
    lab_j = labc_ref[...]                      # (1, tn)  f32
    # exact mirror of the PyTorch row-wise select (any label not in {0,1} -> target 0)
    target = jnp.where(lab_i == 1.0, lab_j,
                       jnp.where(lab_i == 0.0, 1.0 - lab_j, 0.0))

    loss = _softplus(logits) - logits * target
    acc_ref[...] += jnp.sum(loss, axis=-1, keepdims=True)      # lane reduce only

    @pl.when(j == pl.num_programs(1) - 1)
    def _():
        out_ref[...] = acc_ref[...]


def _lahn_mom_kernel(z1_ref, momt_ref, out_ref, acc_ref):
    j = pl.program_id(1)

    @pl.when(j == 0)
    def _():
        acc_ref[...] = jnp.zeros_like(acc_ref)

    logits = jnp.dot(z1_ref[...], momt_ref[...], preferred_element_type=jnp.float32)
    acc_ref[...] += jnp.sum(_softplus(logits), axis=-1, keepdims=True)   # target == 0

    @pl.when(j == pl.num_programs(1) - 1)
    def _():
        out_ref[...] = acc_ref[...]


# ----------------------------------------------------------------------------
# Wrapper helpers
# ----------------------------------------------------------------------------
def _round_up(x, m):
    return ((x + m - 1) // m) * m


def _choose_tile(n, pref, align):
    """Return (tile, padded_n): tile is a multiple of `align`, <= pref, and divides
    padded_n.  Prefers tile==pref when the padding waste is <= 12.5%."""
    n_al = _round_up(n, align)
    if n_al >= pref:
        pad_to_pref = _round_up(n, pref)
        if (pad_to_pref - n) * 8 <= n:
            return pref, pad_to_pref
    best = align
    t = align
    limit = min(pref, n_al)
    while t <= limit:
        if n_al % t == 0:
            best = t
        t += align
    return best, n_al


def _normalize_rows_f32(x, scale=1.0):
    x = x.astype(jnp.float32)
    inv = lax.rsqrt(jnp.maximum(jnp.sum(x * x, axis=-1, keepdims=True), _EPS * _EPS))
    return x * (inv * scale)


def _pad_rows(x, n_pad):
    n = x.shape[0]
    return x if n_pad == n else jnp.pad(x, ((0, n_pad - n), (0, 0)))


def _pad_cols(x, n_pad):
    n = x.shape[1]
    return x if n_pad == n else jnp.pad(x, ((0, 0), (0, n_pad - n)))


# ----------------------------------------------------------------------------
# Forward
# ----------------------------------------------------------------------------
def lahn_forward(features, labels, momentum_features=None, temperature=0.07):
    two_n, d = features.shape
    n = two_n // 2
    z1, z2 = features[:n], features[n:]
    origin_labels = labels[:n].astype(jnp.float32)
    inv_temp = 1.0 / float(temperature)

    # one-pass normalization in the wrapper (f32 math), bf16 MXU operands
    z1n_f32 = _normalize_rows_f32(z1, inv_temp)          # 1/temp folded into z1
    z2n_f32 = _normalize_rows_f32(z2)
    z1n = z1n_f32.astype(jnp.bfloat16)
    z2n = z2n_f32.astype(jnp.bfloat16)

    tm, n_pad_r = _choose_tile(n, 512, 8)
    z1n_p = _pad_rows(z1n, n_pad_r)

    comp = pltpu.CompilerParams(
        dimension_semantics=("parallel", "arbitrary"),    # row tiles shard across TCs (v7x)
        vmem_limit_bytes=64 * 1024 * 1024,
    )

    if momentum_features is None:
        tn, n_pad_c = _choose_tile(n, 512, 128)
        z2t_p = _pad_cols(z2n.T, n_pad_c)                             # (D, n_pad_c)
        labr = _pad_rows(origin_labels.reshape(n, 1), n_pad_r)        # (n_pad_r, 1)
        labc = _pad_cols(origin_labels.reshape(1, n), n_pad_c)        # (1, n_pad_c)
        grid = (n_pad_r // tm, n_pad_c // tn)

        row_sums = pl.pallas_call(
            _lahn_nomom_kernel,
            out_shape=jax.ShapeDtypeStruct((n_pad_r, 1), jnp.float32),
            grid_spec=pltpu.PrefetchScalarGridSpec(
                num_scalar_prefetch=0,
                grid=grid,
                in_specs=[
                    pl.BlockSpec((tm, d), lambda i, j: (i, 0)),   # z1 row tile (resident)
                    pl.BlockSpec((d, tn), lambda i, j: (0, j)),   # z2^T streamed tile
                    pl.BlockSpec((tm, 1), lambda i, j: (i, 0)),   # row labels
                    pl.BlockSpec((1, tn), lambda i, j: (0, j)),   # col labels
                ],
                out_specs=pl.BlockSpec((tm, 1), lambda i, j: (i, 0)),
                scratch_shapes=[pltpu.VMEM((tm, 1), jnp.float32)],
            ),
            compiler_params=comp,
        )(z1n_p, z2t_p, labr, labc)

        # zero-padded pairs each contribute softplus(0) = log(2)
        pad_pairs = n_pad_r * n_pad_c - n * n
        total = jnp.sum(row_sums) - _LN2 * float(pad_pairs)
        return total / float(n * n)

    else:
        m = momentum_features.shape[0]
        momn = _normalize_rows_f32(momentum_features).astype(jnp.bfloat16)
        tn, m_pad = _choose_tile(m, 512, 128)
        momt_p = _pad_cols(momn.T, m_pad)                              # (D, m_pad)
        grid = (n_pad_r // tm, m_pad // tn)

        row_sums = pl.pallas_call(
            _lahn_mom_kernel,
            out_shape=jax.ShapeDtypeStruct((n_pad_r, 1), jnp.float32),
            grid_spec=pltpu.PrefetchScalarGridSpec(
                num_scalar_prefetch=0,
                grid=grid,
                in_specs=[
                    pl.BlockSpec((tm, d), lambda i, j: (i, 0)),   # z1 row tile (resident)
                    pl.BlockSpec((d, tn), lambda i, j: (0, j)),   # momentum queue^T streamed
                ],
                out_specs=pl.BlockSpec((tm, 1), lambda i, j: (i, 0)),
                scratch_shapes=[pltpu.VMEM((tm, 1), jnp.float32)],
            ),
            compiler_params=comp,
        )(z1n_p, momt_p)

        pad_pairs = n_pad_r * m_pad - n * m
        neg_sum = jnp.sum(row_sums) - _LN2 * float(pad_pairs)

        # positive (diagonal) term: trivial O(N*D), done in f32 plain JAX per perf review
        # (frees the tm x D z2 VMEM slab and removes the j==0 bubble from the pipeline).
        diag = jnp.sum(z1n_f32 * z2n_f32, axis=-1)        # already scaled by 1/temp
        pos_sum = jnp.sum(_softplus(diag) - diag)         # target == 1

        return (pos_sum + neg_sum) / float(n * (1 + m))


# ----------------------------------------------------------------------------
# Pure-JAX reference (mirrors the PyTorch forward) for validation
# ----------------------------------------------------------------------------
def _bce_logits(x, t):
    return jnp.maximum(x, 0.0) - x * t + jnp.log1p(jnp.exp(-jnp.abs(x)))


def _ref_forward(features, labels, momentum_features=None, temperature=0.07):
    two_n, _ = features.shape
    n = two_n // 2
    z1, z2 = features[:n], features[n:]
    lab = labels[:n].astype(jnp.float32)

    def cos(a, b):
        num = jnp.sum(a * b, axis=-1)
        den = jnp.maximum(jnp.linalg.norm(a, axis=-1) * jnp.linalg.norm(b, axis=-1), _EPS)
        return num / den

    cos_sim = cos(z1[:, None, :], z2[None, :, :]) / temperature           # (N, N)
    if momentum_features is None:
        target = jnp.where(lab[:, None] == 1.0, lab[None, :],
                           jnp.where(lab[:, None] == 0.0, 1.0 - lab[None, :], 0.0))
        return jnp.mean(_bce_logits(cos_sim, target))
    else:
        diag = jnp.diag(cos_sim).reshape(-1, 1)                           # (N, 1)
        moco = cos(z1[:, None, :], momentum_features[None, :, :]) / temperature  # (N, M)
        logits = jnp.concatenate([diag, moco], axis=1)
        target = jnp.zeros_like(logits).at[:, 0].set(1.0)
        return jnp.mean(_bce_logits(logits, target))


if __name__ == "__main__":
    key = jax.random.PRNGKey(0)
    k1, k2, k3 = jax.random.split(key, 3)

    N, D, M = 8, 32, 16
    features = jax.random.normal(k1, (2 * N, D), dtype=jnp.float32)
    labels = (jax.random.uniform(k2, (2 * N,)) > 0.5).astype(jnp.float32)
    momentum_features = jax.random.normal(k3, (M, D), dtype=jnp.float32)

    # Branch without momentum features
    loss_a = lahn_forward(features, labels)
    # Branch with momentum features
    loss_b = lahn_forward(features, labels, momentum_features=momentum_features)
    jax.block_until_ready((loss_a, loss_b))

    ref_a = _ref_forward(features, labels)
    ref_b = _ref_forward(features, labels, momentum_features)

    # bf16 MXU operands -> relaxed tolerance vs the f32 reference
    assert jnp.allclose(loss_a, ref_a, atol=2e-2, rtol=2e-2), (loss_a, ref_a)
    assert jnp.allclose(loss_b, ref_b, atol=2e-2, rtol=2e-2), (loss_b, ref_b)

    print("KERNEL_OK")
</pallas_src>

<mosaic_0001>
module attributes {stable_mosaic.version = 11 : i64} {
  func.func @_lahn_nomom_kernel(%arg0: i32, %arg1: i32, %arg2: memref<8x32xbf16, #tpu.memory_space<vmem>>, %arg3: memref<32x128xbf16, #tpu.memory_space<vmem>>, %arg4: memref<8x1xf32, #tpu.memory_space<vmem>>, %arg5: memref<1x128xf32, #tpu.memory_space<vmem>>, %arg6: memref<8x1xf32, #tpu.memory_space<vmem>>, %arg7: memref<8x1xf32, #tpu.memory_space<vmem>>) attributes {dimension_semantics = [#tpu.dimension_semantics<parallel>, #tpu.dimension_semantics<arbitrary>], iteration_bounds = array<i64: 1, 1>, scalar_prefetch = 0 : i64, scratch_operands = 1 : i64, tpu.core_type = #tpu.core_type<tc>, window_params = [{transform_indices = @transform_0, window_bounds = array<i64: 8, 32>}, {transform_indices = @transform_1, window_bounds = array<i64: 32, 128>}, {transform_indices = @transform_2, window_bounds = array<i64: 8, 1>}, {transform_indices = @transform_3, window_bounds = array<i64: 1, 128>}, {transform_indices = @transform_4, window_bounds = array<i64: 8, 1>}]} {
    %c0_i32 = arith.constant 0 : i32
    %0 = arith.cmpi eq, %arg1, %c0_i32 : i32
    %1 = arith.extui %0 : i1 to i32
    %c0_i32_0 = arith.constant 0 : i32
    %2 = arith.cmpi ne, %1, %c0_i32_0 : i32
    scf.if %2 {
      %cst_21 = arith.constant 0.000000e+00 : f32
      %43 = vector.broadcast %cst_21 : f32 to vector<8x1xf32>
      %c0_22 = arith.constant 0 : index
      %c0_23 = arith.constant 0 : index
      %44 = vector.load %arg7[%c0_22, %c0_23] : memref<8x1xf32, #tpu.memory_space<vmem>>, vector<8x1xf32>
      tpu.vector_store %arg7[%c0_22, %c0_23], %43 {strides = array<i32>} : memref<8x1xf32, #tpu.memory_space<vmem>>, vector<8x1xf32>,
    } else {
    }
    %c0 = arith.constant 0 : index
    %c0_1 = arith.constant 0 : index
    %3 = vector.load %arg2[%c0, %c0_1] : memref<8x32xbf16, #tpu.memory_space<vmem>>, vector<8x32xbf16>
    %c0_2 = arith.constant 0 : index
    %c0_3 = arith.constant 0 : index
    %4 = vector.load %arg3[%c0_2, %c0_3] : memref<32x128xbf16, #tpu.memory_space<vmem>>, vector<32x128xbf16>
    %cst = arith.constant dense<0.000000e+00> : vector<8x128xf32>
    %5 = tpu.matmul %3, %4, %cst {dimension_numbers = #tpu.dot_dimension_numbers<[1], [0], [0], [1], [0, 0, 1, 1], [], []>} : vector<8x32xbf16>, vector<32x128xbf16>, vector<8x128xf32> -> vector<8x128xf32>
    %c0_4 = arith.constant 0 : index
    %c0_5 = arith.constant 0 : index
    %6 = vector.load %arg4[%c0_4, %c0_5] : memref<8x1xf32, #tpu.memory_space<vmem>>, vector<8x1xf32>
    %c0_6 = arith.constant 0 : index
    %c0_7 = arith.constant 0 : index
    %7 = vector.load %arg5[%c0_6, %c0_7] : memref<1x128xf32, #tpu.memory_space<vmem>>, vector<1x128xf32>
    %cst_8 = arith.constant 1.000000e+00 : f32
    %8 = vector.broadcast %cst_8 : f32 to vector<8x1xf32>
    %9 = arith.cmpf oeq, %6, %8 : vector<8x1xf32>
    %cst_9 = arith.constant 0.000000e+00 : f32
    %10 = vector.broadcast %cst_9 : f32 to vector<8x1xf32>
    %11 = arith.cmpf oeq, %6, %10 : vector<8x1xf32>
    %cst_10 = arith.constant 1.000000e+00 : f32
    %12 = vector.broadcast %cst_10 : f32 to vector<1x128xf32>
    %13 = arith.subf %12, %7 : vector<1x128xf32>
    %cst_11 = arith.constant 0.000000e+00 : f32
    %14 = vector.shape_cast %11 : vector<8x1xi1> to vector<8x1xi1>
    %15 = vector.broadcast %14 : vector<8x1xi1> to vector<8x128xi1>
    %16 = vector.shape_cast %13 : vector<1x128xf32> to vector<1x128xf32>
    %17 = vector.broadcast %16 : vector<1x128xf32> to vector<8x128xf32>
    %18 = vector.broadcast %cst_11 : f32 to vector<8x128xf32>
    %19 = arith.select %15, %17, %18 : vector<8x128xi1>, vector<8x128xf32>
    %20 = vector.shape_cast %9 : vector<8x1xi1> to vector<8x1xi1>
    %21 = vector.broadcast %20 : vector<8x1xi1> to vector<8x128xi1>
    %22 = vector.shape_cast %7 : vector<1x128xf32> to vector<1x128xf32>
    %23 = vector.broadcast %22 : vector<1x128xf32> to vector<8x128xf32>
    %24 = arith.select %21, %23, %19 : vector<8x128xi1>, vector<8x128xf32>
    %cst_12 = arith.constant 0.000000e+00 : f32
    %25 = vector.broadcast %cst_12 : f32 to vector<8x128xf32>
    %26 = arith.maximumf %5, %25 : vector<8x128xf32>
    %27 = math.absf %5 : vector<8x128xf32>
    %cst_13 = arith.constant 0.000000e+00 : f32
    %28 = vector.broadcast %cst_13 : f32 to vector<8x128xf32>
    %29 = arith.subf %28, %27 : vector<8x128xf32>
    %30 = math.exp %29 : vector<8x128xf32>
    %31 = math.log1p %30 : vector<8x128xf32>
    %32 = arith.addf %26, %31 : vector<8x128xf32>
    %33 = arith.mulf %5, %24 : vector<8x128xf32>
    %34 = arith.subf %32, %33 : vector<8x128xf32>
    %c0_14 = arith.constant 0 : index
    %c0_15 = arith.constant 0 : index
    %35 = vector.load %arg7[%c0_14, %c0_15] : memref<8x1xf32, #tpu.memory_space<vmem>>, vector<8x1xf32>
    %cst_16 = arith.constant dense<0.000000e+00> : vector<8xf32>
    %36 = vector.multi_reduction <add>, %34, %cst_16 [1] : vector<8x128xf32> to vector<8xf32>
    %37 = vector.shape_cast %36 : vector<8xf32> to vector<8x1xf32>
    %38 = arith.addf %35, %37 : vector<8x1xf32>
    %c0_17 = arith.constant 0 : index
    %c0_18 = arith.constant 0 : index
    %39 = vector.load %arg7[%c0_17, %c0_18] : memref<8x1xf32, #tpu.memory_space<vmem>>, vector<8x1xf32>
    tpu.vector_store %arg7[%c0_17, %c0_18], %38 {strides = array<i32>} : memref<8x1xf32, #tpu.memory_space<vmem>>, vector<8x1xf32>,
    %c0_i32_19 = arith.constant 0 : i32
    %40 = arith.cmpi eq, %arg1, %c0_i32_19 : i32
    %41 = arith.extui %40 : i1 to i32
    %c0_i32_20 = arith.constant 0 : i32
    %42 = arith.cmpi ne, %41, %c0_i32_20 : i32
    scf.if %42 {
      %c0_21 = arith.constant 0 : index
      %c0_22 = arith.constant 0 : index
      %43 = vector.load %arg7[%c0_21, %c0_22] : memref<8x1xf32, #tpu.memory_space<vmem>>, vector<8x1xf32>
      %c0_23 = arith.constant 0 : index
      %c0_24 = arith.constant 0 : index
      %44 = vector.load %arg6[%c0_23, %c0_24] : memref<8x1xf32, #tpu.memory_space<vmem>>, vector<8x1xf32>
      tpu.vector_store %arg6[%c0_23, %c0_24], %43 {strides = array<i32>} : memref<8x1xf32, #tpu.memory_space<vmem>>, vector<8x1xf32>,
    } else {
    }
    return
  }
  func.func @transform_0(%arg0: i32, %arg1: i32) -> (i32, i32) {
    %c0_i32 = arith.constant 0 : i32
    %c0_i32_0 = arith.constant 0 : i32
    return %arg0, %c0_i32 : i32, i32
  }
  func.func @transform_1(%arg0: i32, %arg1: i32) -> (i32, i32) {
    %c0_i32 = arith.constant 0 : i32
    %c0_i32_0 = arith.constant 0 : i32
    return %c0_i32, %arg1 : i32, i32
  }
  func.func @transform_2(%arg0: i32, %arg1: i32) -> (i32, i32) {
    %c0_i32 = arith.constant 0 : i32
    %c0_i32_0 = arith.constant 0 : i32
    return %arg0, %c0_i32 : i32, i32
  }
  func.func @transform_3(%arg0: i32, %arg1: i32) -> (i32, i32) {
    %c0_i32 = arith.constant 0 : i32
    %c0_i32_0 = arith.constant 0 : i32
    return %c0_i32, %arg1 : i32, i32
  }
  func.func @transform_4(%arg0: i32, %arg1: i32) -> (i32, i32) {
    %c0_i32 = arith.constant 0 : i32
    %c0_i32_0 = arith.constant 0 : i32
    return %arg0, %c0_i32 : i32, i32
  }
}

</mosaic_0001>

<llo_original>
// kernel: tpu_custom_call.1
$region0: #{tpu_custom_call.1}
  #allocation0 [shape = 'u32[]', space=smem, size = 0x4, offset = 0x4, fixed_abs, tag = 'smem constant byte address 0x4 - core index']
  #allocation1 [shape = 'u32[144,128]{1,0:T(1,128)}', space=vmem, size = 0x12000, scoped, tag = 'internal scratch']
  #allocation2 [shape = 'f32[8,1]{1,0:T(8,128)}', space=vmem, size = 0x1000, scoped, tag = 'scratch operand']
  %s0 = inlined_call_operand.hbm [shape: bf16[8,32], index: 0, kind: input, shape index: {}]
  %s1 = inlined_call_operand.hbm [shape: bf16[32,128], index: 1, kind: input, shape index: {}]
  %s2 = inlined_call_operand.hbm [shape: f32[8,1], index: 2, kind: input, shape index: {}]
  %s3 = inlined_call_operand.hbm [shape: f32[1,128], index: 3, kind: input, shape index: {}]
  %s4 = inlined_call_operand.hbm [shape: f32[8,1], index: 4, kind: output, shape index: {}]
  %s5 = sld [smem:[#allocation0]]
  $region50: #{tpu_custom_call.1} parent=0
    _
  %s7 = ssub.s32 1, %s5
  %s8 = scalar_select 0, %s7, %s5
  $region1: #{tpu_custom_call.1} parent=0
    #allocation3 [shape = 'u8[2048]{0}', space=vmem, size = 0x800, scoped, tag = 'input window, operand 0, single buffered']
    #allocation4 [shape = 's32[1]{0}', space=sflag, size = 0x4, scoped, tag = 'scoped memory for tpu_custom_call.1']
    #allocation5 [shape = 's32[1]{0}', space=sflag, size = 0x4, scoped, tag = 'scoped memory for tpu_custom_call.1']
    #allocation6 [shape = 'u8[8192]{0}', space=vmem, size = 0x2000, scoped, tag = 'input window, operand 1, single buffered']
    #allocation7 [shape = 's32[1]{0}', space=sflag, size = 0x4, scoped, tag = 'scoped memory for tpu_custom_call.1']
    #allocation8 [shape = 'u8[4096]{0}', space=vmem, size = 0x1000, scoped, tag = 'input window, operand 2, single buffered']
    #allocation9 [shape = 'u8[512]{0}', space=vmem, size = 0x400, scoped, tag = 'input window, operand 3, single buffered']
    #allocation10 [shape = 's32[1]{0}', space=sflag, size = 0x4, scoped, tag = 'scoped memory for tpu_custom_call.1']
    #allocation11 [shape = 'u8[4096]{0}', space=vmem, size = 0x1000, scoped, tag = 'output window, operand 0, single buffered']
    %9 = vsyncpa [#allocation4], 0
    %10 = vsyncpa [#allocation7], 0
    %11 = vsyncpa [#allocation10], 0
    %12 = vsyncpa [#allocation5], 0
    // Predicated region
    $region2: #{tpu_custom_call.1} parent=1 // pred_check
      _
    $region3: #{tpu_custom_call.1} parent=1 // pred_check_branch
      %14 = sbr.rel (0) target = $region5
    $region4: #{tpu_custom_call.1} parent=1 // pred_region
      %s16 = ssub.s32 64, 64
      %17 = vsyncadd [#allocation4], %s16
      %s19 = sshll.u32 [#allocation3], 4
      %s20 = int_to_ptr.vmem [resolvable:$true] %s19
      %22 = dma.hbm_to_vmem [thread:$0]  %s0, 64, %s20, [#allocation4]
    $region5: #{tpu_custom_call.1} parent=1 // pred_fallthru
      _
    // Predicated region
    $region6: #{tpu_custom_call.1} parent=1 // pred_check
      _
    $region7: #{tpu_custom_call.1} parent=1 // pred_check_branch
      %24 = sbr.rel (0) target = $region9
    $region8: #{tpu_custom_call.1} parent=1 // pred_region
      %s26 = ssub.s32 256, 256
      %27 = vsyncadd [#allocation7], %s26
      %s28 = sshll.u32 [#allocation6], 4
      %s29 = int_to_ptr.vmem [resolvable:$true] %s28
      %34 = dma.hbm_to_vmem [thread:$0]  %s1, 256, %s29, [#allocation7], 64, 64, 4
    $region9: #{tpu_custom_call.1} parent=1 // pred_fallthru
      _
    // Predicated region
    $region10: #{tpu_custom_call.1} parent=1 // pred_check
      _
    $region11: #{tpu_custom_call.1} parent=1 // pred_check_branch
      %36 = sbr.rel (0) target = $region13
    $region12: #{tpu_custom_call.1} parent=1 // pred_region
      %s38 = ssub.s32 128, 128
      %39 = vsyncadd [#allocation7], %s38
      %s41 = sshll.u32 [#allocation8], 4
      %s42 = int_to_ptr.vmem [resolvable:$true] %s41
      %44 = dma.hbm_to_vmem [thread:$0]  %s2, 128, %s42, [#allocation7]
    $region13: #{tpu_custom_call.1} parent=1 // pred_fallthru
      _
    // Predicated region
    $region14: #{tpu_custom_call.1} parent=1 // pred_check
      _
    $region15: #{tpu_custom_call.1} parent=1 // pred_check_branch
      %46 = sbr.rel (0) target = $region17
    $region16: #{tpu_custom_call.1} parent=1 // pred_region
      %s48 = ssub.s32 16, 16
      %49 = vsyncadd [#allocation10], %s48
      %s51 = sshll.u32 [#allocation9], 4
      %s52 = int_to_ptr.vmem [resolvable:$true] %s51
      %54 = dma.hbm_to_vmem [thread:$0]  %s3, 16, %s52, [#allocation10]
    $region17: #{tpu_custom_call.1} parent=1 // pred_fallthru
      _
    // Predicated region
    $region18: #{tpu_custom_call.1} parent=1 // pred_check
      _
    $region19: #{tpu_custom_call.1} parent=1 // pred_check_branch
      %56 = sbr.rel (0) target = $region21
    $region20: #{tpu_custom_call.1} parent=1 // pred_region
      %57 = dma.done [#allocation4], 64
    $region21: #{tpu_custom_call.1} parent=1 // pred_fallthru
      _
    // Predicated region
    $region22: #{tpu_custom_call.1} parent=1 // pred_check
      _
    $region23: #{tpu_custom_call.1} parent=1 // pred_check_branch
      %59 = sbr.rel (0) target = $region25
    $region24: #{tpu_custom_call.1} parent=1 // pred_region
      %60 = dma.done [#allocation7], 256
    $region25: #{tpu_custom_call.1} parent=1 // pred_fallthru
      _
    // Predicated region
    $region26: #{tpu_custom_call.1} parent=1 // pred_check
      _
    $region27: #{tpu_custom_call.1} parent=1 // pred_check_branch
      %62 = sbr.rel (0) target = $region29
    $region28: #{tpu_custom_call.1} parent=1 // pred_region
      %63 = dma.done [#allocation7], 128
    $region29: #{tpu_custom_call.1} parent=1 // pred_fallthru
      _
    // Predicated region
    $region30: #{tpu_custom_call.1} parent=1 // pred_check
      _
    $region31: #{tpu_custom_call.1} parent=1 // pred_check_branch
      %65 = sbr.rel (0) target = $region33
    $region32: #{tpu_custom_call.1} parent=1 // pred_region
      %66 = dma.done [#allocation10], 16
    $region33: #{tpu_custom_call.1} parent=1 // pred_fallthru
      _
    %p68 = scmp.eq.s32.totalorder 0, 0
    // Predicated region
    $region34: #{tpu_custom_call.1} parent=1 // pred_check
      %p69 = pneg %p68
    $region35: #{tpu_custom_call.1} parent=1 // pred_check_branch
      %71 = sbr.rel (%p69) target = $region37
    $region36: #{tpu_custom_call.1} parent=1 // pred_region
      %vm72 = vcmask 7168
      %73 = vst.msk [vmem:[#allocation2] sm:$0xff] %vm72, 0.0
    $region37: #{tpu_custom_call.1} parent=1 // pred_fallthru
      _
    %v74 = vld [vmem:[#allocation3] sm:$0xf]
    %v75 = vld [vmem:[#allocation6] sm:$0xf]
    %v76 = vld [vmem:[#allocation6 + $0x4] sm:$0xf]
    %v77 = vld [vmem:[#allocation6 + $0x8] sm:$0xf]
    %v78 = vld [vmem:[#allocation6 + $0xc] sm:$0xf]
    %v83 = vunpack.c.l.b16 %v75
    %v84 = vunpack.c.l.b16 %v76
    %v85 = vunpack.c.l.b16 %v77
    %v86 = vunpack.c.l.b16 %v78
    %v87 = vpack.c.b16 %v84, %v83
    %v88 = vpack.c.b16 %v86, %v85
    %vm91 = vcmask 261120
    %v93 = vsel %vm91, %v74, 0
    %95 = vmatprep.subr.bf16.mxu0 0
    %96 = vmatpush1.bf16.msra.mxu0 %v87
    %97 = vmatprep.subr.bf16.mxu0 0
    %98 = vmatpush1.bf16.msra.mxu0 %v88
    %99 = vmatprep.subr.bf16.mxu0 0
    %100 = vmatpush1.bf16.msra.mxu0 0
    %101 = vmatprep.subr.bf16.mxu0 0
    %102 = vmatpush1.bf16.msra.mxu0 0
    %103 = vmatprep.subr.bf16.mxu0 0
    %104 = vmatpush1.bf16.msra.mxu0 0
    %105 = vmatprep.subr.bf16.mxu0 0
    %106 = vmatpush1.bf16.msra.mxu0 0
    %107 = vmatprep.subr.bf16.mxu0 0
    %108 = vmatpush1.bf16.msra.mxu0 0
    %109 = vmatprep.subr.bf16.mxu0 0
    %110 = vmatpush1.bf16.msra.mxu0 0
    %111 = vmatprep.subr.bf16.mxu0 0
    %112 = vmatpush1.bf16.msra.mxu0 0
    %113 = vmatprep.subr.bf16.mxu0 0
    %114 = vmatpush1.bf16.msra.mxu0 0
    %115 = vmatprep.subr.bf16.mxu0 0
    %116 = vmatpush1.bf16.msra.mxu0 0
    %117 = vmatprep.subr.bf16.mxu0 0
    %118 = vmatpush1.bf16.msra.mxu0 0
    %119 = vmatprep.subr.bf16.mxu0 0
    %120 = vmatpush1.bf16.msra.mxu0 0
    %121 = vmatprep.subr.bf16.mxu0 0
    %122 = vmatpush1.bf16.msra.mxu0 0
    %123 = vmatprep.subr.bf16.mxu0 0
    %124 = vmatpush1.bf16.msra.mxu0 0
    %125 = vmatprep.subr.bf16.mxu0 0
    %126 = vmatpush1.bf16.msra.mxu0 0
    %127 = vmatprep.mubr.bf16.mxu0 0
    %128 = vmatmul.mubr.bf16.gmra.mrb[0].mxu0 %v93
    %v129 = vpop.f32.mrb[0].mxu0
    %v130 = vadd.f32 0.0, %v129
    %v131 = vpop.f32.mrb[0].mxu0
    %v132 = vpop.f32.mrb[0].mxu0
    %v133 = vpop.f32.mrb[0].mxu0
    %134 = vdwg.mxu0
    %v135 = vld [vmem:[#allocation8] sm:$0xff]
    %v136 = vld [vmem:[#allocation9] sm:$0x1]
    %vm137 = vcmp.eq.f32.partialorder %v135, 1.0
    %vm138 = vcmp.eq.f32.partialorder %v135, 0.0
    %v139 = vsub.f32 1.0, %v136
    %v140 = vsel %vm138, 1, 0
    %141 = vset.pattern.permute.xlu0 0
    %142 = vperm.xlu0 %141, %v140
    %v143 = vpop.permute.xlu0 %142
    %vm144 = vcmp.eq.s32.totalorder %v143, 1
    %v146 = vlaneseq
    %v147 = vshrl.u32 %v146, 7
    %v148 = vsub.s32 0, %v147
    %v149 = vrot.slane %v139, %v148
    %v151 = vsel %vm144, %v149, 0.0
    %v152 = vsel %vm137, 1, 0
    %153 = vset.pattern.permute.xlu0 0
    %154 = vperm.xlu0 %153, %v152
    %v155 = vpop.permute.xlu0 %154
    %vm156 = vcmp.eq.s32.totalorder %v155, 1
    %v158 = vlaneseq
    %v159 = vshrl.u32 %v158, 7
    %v160 = vsub.s32 0, %v159
    %v161 = vrot.slane %v136, %v160
    %v163 = vsel %vm156, %v161, %v151
    %v164 = vmax.f32 %v130, 0.0
    %v165 = vand.u32 2147483647, %v130
    %v166 = vsub.f32 0.0, %v165
    %v167 = vmul.f32 %v166, 1.442695
    %v168 = vpow.pop %v167
    %v169 = vadd.f32 %v168, 1.0
    %v170 = vlog2.pop %v169
    %v171 = vmul.f32 %v170, 0.6931472
    %v172 = vmul.f32 -0.5, %v168
    %v173 = vadd.f32 %v172, 1.0
    %v174 = vmul.f32 %v173, %v168
    %v175 = vand.u32 2147483647, %v168
    %vm176 = vcmp.lt.f32.partialorder %v175, 0.0004427343
    %v177 = vsel %vm176, %v174, %v171
    %v178 = vadd.f32 %v164, %v177
    %v179 = vmul.f32 %v130, %v163
    %v180 = vsub.f32 %v178, %v179
    %v181 = vld [vmem:[#allocation2] sm:$0xff]
    %182 = vadd.xlane.f32.xlu0 %v180
    %v183 = vpop.xlane.xlu0 %182
    %v184 = vadd.f32 %v181, %v183
    %vm185 = vcmask 7168
    %186 = vst.msk [vmem:[#allocation2] sm:$0xff] %vm185, %v184
    // Predicated region
    $region38: #{tpu_custom_call.1} parent=1 // pred_check
      %p187 = pneg %p68
    $region39: #{tpu_custom_call.1} parent=1 // pred_check_branch
      %189 = sbr.rel (%p187) target = $region41
    $region40: #{tpu_custom_call.1} parent=1 // pred_region
      %v190 = vld [vmem:[#allocation2] sm:$0xff]
      %191 = vst.msk [vmem:[#allocation11] sm:$0xff] %vm185, %v190
    $region41: #{tpu_custom_call.1} parent=1 // pred_fallthru
      _
    // Predicated region
    $region42: #{tpu_custom_call.1} parent=1 // pred_check
      _
    $region43: #{tpu_custom_call.1} parent=1 // pred_check_branch
      %193 = sbr.rel (0) target = $region45
    $region44: #{tpu_custom_call.1} parent=1 // pred_region
      %s195 = ssub.s32 128, 128
      %196 = vsyncadd [#allocation5], %s195
      %s198 = sshll.u32 [#allocation11], 4
      %s199 = int_to_ptr.vmem [resolvable:$true] %s198
      %201 = dma.vmem_to_hbm [thread:$0]  %s199, 128, %s4, [#allocation5]
    $region45: #{tpu_custom_call.1} parent=1 // pred_fallthru
      _
    // Predicated region
    $region46: #{tpu_custom_call.1} parent=1 // pred_check
      _
    $region47: #{tpu_custom_call.1} parent=1 // pred_check_branch
      %203 = sbr.rel (0) target = $region49
    $region48: #{tpu_custom_call.1} parent=1 // pred_region
      %204 = dma.done [#allocation5], 128
    $region49: #{tpu_custom_call.1} parent=1 // pred_fallthru
      _
    %205 = vsyncpa [#allocation4], 1
    %206 = vsyncpa [#allocation7], 1
    %207 = vsyncpa [#allocation10], 1
    %208 = vsyncpa [#allocation5], 1

</llo_original>
